<compile_context>
chip_gen: v5e
topology: v5e:2x2
jax: 0.10.0
libtpu: 0.0.40
codegen_flags: <defaults>
</compile_context>

<pallas_src>
import jax
import jax.numpy as jnp
from jax import lax
from jax.experimental import pallas as pl
from jax.experimental.pallas import tpu as pltpu


def _normalize_linear_kernel(x_ref, w_ref, b_ref, o_ref):
    # x_ref: (TB, E), w_ref: (Lp, E) raw (un-transposed) weight, b_ref: (1, Lp)
    x = x_ref[...].astype(jnp.float32)

    # F.normalize(x, p=2, dim=1, eps=1e-12) == x * rsqrt(max(sum(x^2), eps^2))
    sq_sum = jnp.sum(x * x, axis=-1, keepdims=True)          # (TB, 1)
    inv_norm = lax.rsqrt(jnp.maximum(sq_sum, 1e-24))          # EUP, no VALU divide
    x_n = x * inv_norm                                        # (TB, E)

    # x_n @ W^T without materializing W^T: contract axis 1 of both operands.
    out = lax.dot_general(
        x_n, w_ref[...].astype(jnp.float32),
        dimension_numbers=(((1,), (1,)), ((), ())),
        preferred_element_type=jnp.float32)                   # (TB, Lp)
    o_ref[...] = (out + b_ref[...]).astype(o_ref.dtype)


def neural_network_forward(x, weight, bias, *, tile_b=256):
    """x: (B, E), weight: (L, E), bias: (L,) -> (B, L)"""
    B, E = x.shape
    L = weight.shape[0]

    # Lane-dense output: pad L up to a multiple of 128 with zeros.
    Lp = ((L + 127) // 128) * 128
    if Lp != L:
        w_p = jnp.zeros((Lp, E), weight.dtype).at[:L, :].set(weight)
        b_p = jnp.zeros((1, Lp), bias.dtype).at[0, :L].set(bias)
    else:
        w_p = weight
        b_p = bias.reshape(1, Lp)

    # Batch tiling: sublane granularity 8, cap tile at `tile_b`.
    tb = min(tile_b, ((B + 7) // 8) * 8)
    Bp = ((B + tb - 1) // tb) * tb
    x_p = x if Bp == B else jnp.pad(x, ((0, Bp - B), (0, 0)))

    # TODO(synk): for very large E, additionally tile E with an f32 accumulator
    # scratch (needed to stay inside v7x's 64 MiB VMEM).
    out = pl.pallas_call(
        _normalize_linear_kernel,
        out_shape=jax.ShapeDtypeStruct((Bp, Lp), x.dtype),
        grid_spec=pltpu.PrefetchScalarGridSpec(
            num_scalar_prefetch=0,
            grid=(Bp // tb,),
            in_specs=[
                pl.BlockSpec((tb, E), lambda i: (i, 0)),    # batch-tiled x
                pl.BlockSpec((Lp, E), lambda i: (0, 0)),    # resident weight
                pl.BlockSpec((1, Lp), lambda i: (0, 0)),    # resident bias
            ],
            out_specs=pl.BlockSpec((tb, Lp), lambda i: (i, 0)),
        ),
        compiler_params=pltpu.CompilerParams(
            dimension_semantics=("parallel",)),
    )(x_p, w_p, b_p)

    return out[:B, :L]


if __name__ == "__main__":
    # Shapes implied by the module: embbed_size=32, linear_size=32, batch=8
    batch, embbed_size, linear_size = 8, 32, 32

    key = jax.random.PRNGKey(0)
    kx, kb = jax.random.split(key)

    x = jax.random.normal(kx, (batch, embbed_size), dtype=jnp.float32)

    # torch.nn.init.eye_(self.linear.weight): identity-pattern weight (L, E)
    weight = jnp.eye(linear_size, embbed_size, dtype=jnp.float32)
    # nn.Linear default bias init ~ U(-1/sqrt(E), 1/sqrt(E)), seeded deterministically
    bound = 1.0 / (embbed_size ** 0.5)
    bias = jax.random.uniform(kb, (linear_size,), minval=-bound, maxval=bound,
                              dtype=jnp.float32)

    out = neural_network_forward(x, weight, bias)
    jax.block_until_ready(out)

    # Reference check in plain JAX
    x32 = x.astype(jnp.float32)
    ref = x32 / jnp.maximum(jnp.linalg.norm(x32, axis=1, keepdims=True), 1e-12)
    ref = ref @ weight.T + bias
    assert out.shape == (batch, linear_size)
    assert jnp.allclose(out, ref, atol=1e-5, rtol=1e-5)

    print("KERNEL_OK")
</pallas_src>

<mosaic_0001>
module attributes {stable_mosaic.version = 11 : i64} {
  func.func @_normalize_linear_kernel(%arg0: i32, %arg1: memref<8x32xf32, #tpu.memory_space<vmem>>, %arg2: memref<128x32xf32, #tpu.memory_space<vmem>>, %arg3: memref<1x128xf32, #tpu.memory_space<vmem>>, %arg4: memref<8x128xf32, #tpu.memory_space<vmem>>) attributes {dimension_semantics = [#tpu.dimension_semantics<parallel>], iteration_bounds = array<i64: 1>, scalar_prefetch = 0 : i64, scratch_operands = 0 : i64, tpu.core_type = #tpu.core_type<tc>, window_params = [{transform_indices = @transform_0, window_bounds = array<i64: 8, 32>}, {pipeline_mode = #tpu.pipeline_mode<synchronous>, transform_indices = @transform_1, window_bounds = array<i64: 128, 32>}, {pipeline_mode = #tpu.pipeline_mode<synchronous>, transform_indices = @transform_2, window_bounds = array<i64: 1, 128>}, {transform_indices = @transform_3, window_bounds = array<i64: 8, 128>}]} {
    %c0 = arith.constant 0 : index
    %c0_0 = arith.constant 0 : index
    %0 = vector.load %arg1[%c0, %c0_0] : memref<8x32xf32, #tpu.memory_space<vmem>>, vector<8x32xf32>
    %1 = arith.mulf %0, %0 : vector<8x32xf32>
    %cst = arith.constant dense<0.000000e+00> : vector<8xf32>
    %2 = vector.multi_reduction <add>, %1, %cst [1] : vector<8x32xf32> to vector<8xf32>
    %3 = vector.shape_cast %2 : vector<8xf32> to vector<8x1xf32>
    %cst_1 = arith.constant 1.000000e-24 : f32
    %4 = vector.broadcast %cst_1 : f32 to vector<8x1xf32>
    %5 = arith.maximumf %3, %4 : vector<8x1xf32>
    %6 = math.rsqrt %5 : vector<8x1xf32>
    %7 = vector.broadcast %6 : vector<8x1xf32> to vector<8x32xf32>
    %8 = arith.mulf %0, %7 : vector<8x32xf32>
    %c0_2 = arith.constant 0 : index
    %c0_3 = arith.constant 0 : index
    %9 = vector.load %arg2[%c0_2, %c0_3] : memref<128x32xf32, #tpu.memory_space<vmem>>, vector<128x32xf32>
    %cst_4 = arith.constant dense<0.000000e+00> : vector<8x128xf32>
    %10 = tpu.matmul %8, %9, %cst_4 {dimension_numbers = #tpu.dot_dimension_numbers<[1], [1], [0], [0], [0, 0, 1, 0], [], []>} : vector<8x32xf32>, vector<128x32xf32>, vector<8x128xf32> -> vector<8x128xf32>
    %c0_5 = arith.constant 0 : index
    %c0_6 = arith.constant 0 : index
    %11 = vector.load %arg3[%c0_5, %c0_6] : memref<1x128xf32, #tpu.memory_space<vmem>>, vector<1x128xf32>
    %12 = vector.broadcast %11 : vector<1x128xf32> to vector<8x128xf32>
    %13 = arith.addf %10, %12 : vector<8x128xf32>
    %c0_7 = arith.constant 0 : index
    %c0_8 = arith.constant 0 : index
    %14 = vector.load %arg4[%c0_7, %c0_8] : memref<8x128xf32, #tpu.memory_space<vmem>>, vector<8x128xf32>
    tpu.vector_store %arg4[%c0_7, %c0_8], %13 {strides = array<i32>} : memref<8x128xf32, #tpu.memory_space<vmem>>, vector<8x128xf32>,
    return
  }
  func.func @transform_0(%arg0: i32) -> (i32, i32) {
    %c0_i32 = arith.constant 0 : i32
    %c0_i32_0 = arith.constant 0 : i32
    return %arg0, %c0_i32 : i32, i32
  }
  func.func @transform_1(%arg0: i32) -> (i32, i32) {
    %c0_i32 = arith.constant 0 : i32
    %c0_i32_0 = arith.constant 0 : i32
    %c0_i32_1 = arith.constant 0 : i32
    return %c0_i32, %c0_i32_0 : i32, i32
  }
  func.func @transform_2(%arg0: i32) -> (i32, i32) {
    %c0_i32 = arith.constant 0 : i32
    %c0_i32_0 = arith.constant 0 : i32
    %c0_i32_1 = arith.constant 0 : i32
    return %c0_i32, %c0_i32_0 : i32, i32
  }
  func.func @transform_3(%arg0: i32) -> (i32, i32) {
    %c0_i32 = arith.constant 0 : i32
    %c0_i32_0 = arith.constant 0 : i32
    return %arg0, %c0_i32 : i32, i32
  }
}

</mosaic_0001>

<llo_original>
// kernel: tpu_custom_call.1
$region0: #{tpu_custom_call.1}
  #allocation0 [shape = 'u32[]', space=smem, size = 0x4, offset = 0x4, fixed_abs, tag = 'smem constant byte address 0x4 - core index']
  #allocation1 [shape = 'u32[72,128]{1,0:T(1,128)}', space=vmem, size = 0x9000, scoped, tag = 'internal scratch']
  %s0 = inlined_call_operand.vmem [shape: f32[8,32], index: 0, kind: input, shape index: {}]
  %s1 = inlined_call_operand.vmem [shape: f32[128,32], index: 1, kind: input, shape index: {}]
  %s2 = inlined_call_operand.vmem [shape: f32[1,128], index: 2, kind: input, shape index: {}]
  %s3 = inlined_call_operand.hbm [shape: f32[8,128], index: 3, kind: output, shape index: {}]
  %s4 = sld [smem:[#allocation0]]
  $region22: #{tpu_custom_call.1} parent=0
    _
  %s6 = ssub.s32 1, %s4
  %s7 = scalar_select 0, %s6, %s4
  $region1: #{tpu_custom_call.1} parent=0
    #allocation2 [shape = 'u8[4096]{0}', space=vmem, size = 0x1000, scoped, tag = 'output window, operand 0, single buffered']
    #allocation3 [shape = 's32[1]{0}', space=sflag, size = 0x4, scoped, tag = 'scoped memory for tpu_custom_call.1']
    %8 = vsyncpa [#allocation3], 0
    // Predicated region
    $region2: #{tpu_custom_call.1} parent=1 // pred_check
      _
    $region3: #{tpu_custom_call.1} parent=1 // pred_check_branch
      %10 = sbr.rel (0) target = $region5
    $region4: #{tpu_custom_call.1} parent=1 // pred_region
      _
    $region5: #{tpu_custom_call.1} parent=1 // pred_fallthru
      _
    // Predicated region
    $region6: #{tpu_custom_call.1} parent=1 // pred_check
      _
    $region7: #{tpu_custom_call.1} parent=1 // pred_check_branch
      %12 = sbr.rel (0) target = $region9
    $region8: #{tpu_custom_call.1} parent=1 // pred_region
      _
    $region9: #{tpu_custom_call.1} parent=1 // pred_fallthru
      _
    // Predicated region
    $region10: #{tpu_custom_call.1} parent=1 // pred_check
      _
    $region11: #{tpu_custom_call.1} parent=1 // pred_check_branch
      %14 = sbr.rel (0) target = $region13
    $region12: #{tpu_custom_call.1} parent=1 // pred_region
      _
    $region13: #{tpu_custom_call.1} parent=1 // pred_fallthru
      _
    %v15 = vld [vmem:[%s0] sm:$0xff]
    %v16 = vmul.f32 %v15, %v15
    %vm17 = vcmask 261120
    %v18 = vsel %vm17, %v16, 0.0
    %19 = vadd.xlane.f32.xlu0 %v18
    %v20 = vpop.xlane.xlu0 %19
    %v21 = vmax.f32 %v20, 1e-24
    %v22 = vrsqrt.pop %v21
    %v23 = vmul.f32 %v22, %v21
    %v24 = vmul.f32 %v23, %v22
    %v25 = vmul.f32 0.5, %v24
    %v26 = vsub.f32 1.5, %v25
    %v27 = vmul.f32 %v22, %v26
    %vm28 = vweird.f32 %v21
    %vm29 = vweird.f32 %v22
    %vm30 = vmor %vm28, %vm29
    %v31 = vsel %vm30, %v22, %v27
    %v32 = vmul.f32 %v15, %v31
    %v33 = vld [vmem:[%s1] sm:$0xff]
    %v34 = vld [vmem:[%s1 + $0x8] sm:$0xff]
    %v35 = vld [vmem:[%s1 + $0x10] sm:$0xff]
    %v36 = vld [vmem:[%s1 + $0x18] sm:$0xff]
    %v37 = vld [vmem:[%s1 + $0x20] sm:$0xff]
    %v38 = vld [vmem:[%s1 + $0x28] sm:$0xff]
    %v39 = vld [vmem:[%s1 + $0x30] sm:$0xff]
    %v40 = vld [vmem:[%s1 + $0x38] sm:$0xff]
    %v41 = vld [vmem:[%s1 + $0x40] sm:$0xff]
    %v42 = vld [vmem:[%s1 + $0x48] sm:$0xff]
    %v43 = vld [vmem:[%s1 + $0x50] sm:$0xff]
    %v44 = vld [vmem:[%s1 + $0x58] sm:$0xff]
    %v45 = vld [vmem:[%s1 + $0x60] sm:$0xff]
    %v46 = vld [vmem:[%s1 + $0x68] sm:$0xff]
    %v47 = vld [vmem:[%s1 + $0x70] sm:$0xff]
    %v48 = vld [vmem:[%s1 + $0x78] sm:$0xff]
    %v49 = vld [vmem:[%s2] sm:$0x1]
    %v51 = vperm.slane %v49, 0
    %v54 = vsel %vm17, %v32, 0
    %v57 = vsel %vm17, %v33, 0
    %v60 = vsel %vm17, %v34, 0
    %v63 = vsel %vm17, %v35, 0
    %v66 = vsel %vm17, %v36, 0
    %v69 = vsel %vm17, %v37, 0
    %v72 = vsel %vm17, %v38, 0
    %v75 = vsel %vm17, %v39, 0
    %v78 = vsel %vm17, %v40, 0
    %v81 = vsel %vm17, %v41, 0
    %v84 = vsel %vm17, %v42, 0
    %v87 = vsel %vm17, %v43, 0
    %v90 = vsel %vm17, %v44, 0
    %v93 = vsel %vm17, %v45, 0
    %v96 = vsel %vm17, %v46, 0
    %v99 = vsel %vm17, %v47, 0
    %v102 = vsel %vm17, %v48, 0
    %104 = vmatpush.xpose.msra.mxu0 %v102
    %105 = vmatpush.xpose.msra.mxu0 %v99
    %106 = vmatpush.xpose.msra.mxu0 %v96
    %107 = vmatpush.xpose.msra.mxu0 %v93
    %108 = vmatpush.xpose.msra.mxu0 %v90
    %109 = vmatpush.xpose.msra.mxu0 %v87
    %110 = vmatpush.xpose.msra.mxu0 %v84
    %111 = vmatpush.xpose.msra.mxu0 %v81
    %112 = vmatpush.xpose.msra.mxu0 %v78
    %113 = vmatpush.xpose.msra.mxu0 %v75
    %114 = vmatpush.xpose.msra.mxu0 %v72
    %115 = vmatpush.xpose.msra.mxu0 %v69
    %116 = vmatpush.xpose.msra.mxu0 %v66
    %117 = vmatpush.xpose.msra.mxu0 %v63
    %118 = vmatpush.xpose.msra.mxu0 %v60
    %119 = vmatpush.xpose.msra.mxu0 %v57
    %120 = vmatmul.f32.gmra.mxu0 %v54
    %v121 = vpop.f32.mrf.mxu0
    %v122 = vadd.f32 %v51, %v121
    %123 = vdwg.mxu0
    %124 = vst [vmem:[#allocation2] sm:$0xff] %v122
    // Predicated region
    $region14: #{tpu_custom_call.1} parent=1 // pred_check
      _
    $region15: #{tpu_custom_call.1} parent=1 // pred_check_branch
      %126 = sbr.rel (0) target = $region17
    $region16: #{tpu_custom_call.1} parent=1 // pred_region
      %128 = vsyncadd [#allocation3], 0
      %s130 = sshll.u32 [#allocation2], 4
      %s131 = int_to_ptr.vmem [resolvable:$true] %s130
      %s132 = sshll.u32 %s3, 4
      %s133 = int_to_ptr.hbm [resolvable:$true] %s132
      %135 = dma.vmem_to_hbm [thread:$0]  %s131, 128, %s133, [#allocation3]
    $region17: #{tpu_custom_call.1} parent=1 // pred_fallthru
      _
    // Predicated region
    $region18: #{tpu_custom_call.1} parent=1 // pred_check
      _
    $region19: #{tpu_custom_call.1} parent=1 // pred_check_branch
      %137 = sbr.rel (0) target = $region21
    $region20: #{tpu_custom_call.1} parent=1 // pred_region
      %139 = dma.done [#allocation3], 128
    $region21: #{tpu_custom_call.1} parent=1 // pred_fallthru
      _
    %140 = vsyncpa [#allocation3], 1

</llo_original>
